<compile_context>
chip_gen: v7x
topology: tpu7x:2x2x1
jax: 0.10.0
libtpu: 0.0.40
codegen_flags: <defaults>
</compile_context>

<pallas_src>
import functools

import jax
import jax.numpy as jnp
from jax.experimental import pallas as pl
from jax.experimental.pallas import tpu as pltpu


def _round_up(n, m):
    return ((n + m - 1) // m) * m


def qnetwork_fwd_kernel(x_ref, w_ref, p_ref, o_ref, *, h_real, needs_mask):
    # x_ref: (TB, D_in)
    # w_ref: (D_in, H_pad)   -- padded columns are zero
    # p_ref: (3, H_pad)      -- rows: [bias, gamma, beta], padded entries zero
    # o_ref: (TB, H_pad)
    x = x_ref[...]
    w = w_ref[...]
    bias = p_ref[0:1, :]
    gamma = p_ref[1:2, :]
    beta = p_ref[2:3, :]

    # Linear: y = x @ W + b (MXU, f32 accumulate). Padded columns of y are 0
    # by construction (zero weight columns + zero bias).
    y = jnp.dot(x, w, preferred_element_type=jnp.float32) + bias

    inv_h = 1.0 / float(h_real)

    # LayerNorm over the real hidden dim (biased variance, eps=1e-5 like torch).
    mean = jnp.sum(y, axis=-1, keepdims=True) * inv_h        # padded cols are 0
    centered = y - mean
    if needs_mask:
        # Zero out padded columns so they do not contribute to the variance.
        lane = jax.lax.broadcasted_iota(jnp.int32, (1, y.shape[-1]), 1)
        centered = jnp.where(lane < h_real, centered, 0.0)
    var = jnp.sum(centered * centered, axis=-1, keepdims=True) * inv_h
    # Fold gamma into the scale (gamma is zero in padded cols -> padded out = 0).
    scale = jax.lax.rsqrt(var + 1e-5) * gamma
    y = centered * scale + beta

    # ReLU; Dropout is identity in eval mode.
    o_ref[...] = jnp.maximum(y, 0.0).astype(o_ref.dtype)


def qnetwork_forward(x, w, b, gamma, beta, *, block_b=512,
                     compute_dtype=jnp.float32, out_dtype=jnp.float32):
    """x: (B, D_in); w: (D_in, H); b, gamma, beta: (H,). Returns (B, H) in out_dtype.

    compute_dtype=jnp.bfloat16 halves matmul-input DMA bytes and doubles MXU
    throughput at a small accuracy cost (accumulation stays f32).
    """
    B, D_in = x.shape
    H = w.shape[1]

    # Lane-dense hidden dimension (multiple of 128).
    H_pad = max(128, _round_up(H, 128))
    # Batch tile: multiple of 8 sublanes, capped for VMEM.
    TB = min(block_b, _round_up(B, 8))
    B_pad = _round_up(B, TB)

    # Pad operands (zeros in the padded region keep the math exact).
    x_p = jnp.zeros((B_pad, D_in), compute_dtype).at[:B].set(x.astype(compute_dtype))
    w_p = jnp.zeros((D_in, H_pad), compute_dtype).at[:, :H].set(w.astype(compute_dtype))
    # Fused parameter slab: rows [bias, gamma, beta], padded entries zero.
    params = jnp.zeros((3, H_pad), jnp.float32)
    params = params.at[0, :H].set(b.astype(jnp.float32))
    params = params.at[1, :H].set(gamma.astype(jnp.float32))
    params = params.at[2, :H].set(beta.astype(jnp.float32))

    grid = (B_pad // TB,)
    itemsize = jnp.dtype(compute_dtype).itemsize
    cost = pl.CostEstimate(
        flops=2 * B_pad * D_in * H_pad,
        transcendentals=B_pad,                                 # rsqrt per row
        bytes_accessed=(B_pad * D_in * itemsize                # x
                        + D_in * H_pad * itemsize              # w
                        + 3 * H_pad * 4                        # params
                        + B_pad * H_pad * jnp.dtype(out_dtype).itemsize),  # out
    )

    out_padded = pl.pallas_call(
        functools.partial(qnetwork_fwd_kernel, h_real=H, needs_mask=(H != H_pad)),
        out_shape=jax.ShapeDtypeStruct((B_pad, H_pad), out_dtype),
        grid=grid,
        in_specs=[
            pl.BlockSpec((TB, D_in), lambda i: (i, 0)),      # x: tiled over batch
            pl.BlockSpec((D_in, H_pad), lambda i: (0, 0)),   # w: resident
            pl.BlockSpec((3, H_pad), lambda i: (0, 0)),      # [b, gamma, beta]: resident
        ],
        out_specs=pl.BlockSpec((TB, H_pad), lambda i: (i, 0)),
        compiler_params=pltpu.CompilerParams(
            dimension_semantics=("parallel",),               # v7x: 2-TC sharding
            vmem_limit_bytes=32 * 1024 * 1024,               # safe on v5e/v6e/v7x
        ),
        cost_estimate=cost,
    )(x_p, w_p, params)

    return out_padded[:B, :H]


def reference_forward(x, w, b, gamma, beta):
    y = x @ w + b
    mean = jnp.mean(y, axis=-1, keepdims=True)
    var = jnp.mean((y - mean) ** 2, axis=-1, keepdims=True)
    y = (y - mean) / jnp.sqrt(var + 1e-5) * gamma + beta
    return jnp.maximum(y, 0.0)


if __name__ == "__main__":
    key = jax.random.PRNGKey(0)
    batch, input_dim, hidden_dim = 8, 16, 32

    kx, kw, kb = jax.random.split(key, 3)
    x = jax.random.normal(kx, (batch, input_dim), dtype=jnp.float32)

    # Deterministic parameter init (PyTorch nn.Linear-like uniform bound).
    bound = 1.0 / (input_dim ** 0.5)
    w = jax.random.uniform(kw, (input_dim, hidden_dim), jnp.float32, -bound, bound)
    b = jax.random.uniform(kb, (hidden_dim,), jnp.float32, -bound, bound)
    gamma = jnp.ones((hidden_dim,), jnp.float32)   # LayerNorm weight init
    beta = jnp.zeros((hidden_dim,), jnp.float32)   # LayerNorm bias init

    out = qnetwork_forward(x, w, b, gamma, beta)
    jax.block_until_ready(out)

    ref = reference_forward(x, w, b, gamma, beta)
    assert out.shape == (batch, hidden_dim)
    assert jnp.allclose(out, ref, atol=1e-5, rtol=1e-5)

    print("KERNEL_OK")
</pallas_src>

<mosaic_0001>
module attributes {stable_mosaic.version = 11 : i64} {
  func.func @qnetwork_fwd_kernel(%arg0: i32, %arg1: memref<8x16xf32, #tpu.memory_space<vmem>>, %arg2: memref<16x128xf32, #tpu.memory_space<vmem>>, %arg3: memref<3x128xf32, #tpu.memory_space<vmem>>, %arg4: memref<8x128xf32, #tpu.memory_space<vmem>>) attributes {dimension_semantics = [#tpu.dimension_semantics<parallel>], iteration_bounds = array<i64: 1>, scalar_prefetch = 0 : i64, scratch_operands = 0 : i64, tpu.core_type = #tpu.core_type<tc>, window_params = [{transform_indices = @transform_0, window_bounds = array<i64: 8, 16>}, {pipeline_mode = #tpu.pipeline_mode<synchronous>, transform_indices = @transform_1, window_bounds = array<i64: 16, 128>}, {pipeline_mode = #tpu.pipeline_mode<synchronous>, transform_indices = @transform_2, window_bounds = array<i64: 3, 128>}, {transform_indices = @transform_3, window_bounds = array<i64: 8, 128>}]} {
    %c0 = arith.constant 0 : index
    %c0_0 = arith.constant 0 : index
    %0 = vector.load %arg1[%c0, %c0_0] : memref<8x16xf32, #tpu.memory_space<vmem>>, vector<8x16xf32>
    %c0_1 = arith.constant 0 : index
    %c0_2 = arith.constant 0 : index
    %1 = vector.load %arg2[%c0_1, %c0_2] : memref<16x128xf32, #tpu.memory_space<vmem>>, vector<16x128xf32>
    %c0_3 = arith.constant 0 : index
    %c0_4 = arith.constant 0 : index
    %2 = vector.load %arg3[%c0_3, %c0_4] : memref<3x128xf32, #tpu.memory_space<vmem>>, vector<1x128xf32>
    %c1 = arith.constant 1 : index
    %c0_5 = arith.constant 0 : index
    %3 = vector.load %arg3[%c1, %c0_5] : memref<3x128xf32, #tpu.memory_space<vmem>>, vector<1x128xf32>
    %c2 = arith.constant 2 : index
    %c0_6 = arith.constant 0 : index
    %4 = vector.load %arg3[%c2, %c0_6] : memref<3x128xf32, #tpu.memory_space<vmem>>, vector<1x128xf32>
    %cst = arith.constant dense<0.000000e+00> : vector<8x128xf32>
    %5 = tpu.matmul %0, %1, %cst {dimension_numbers = #tpu.dot_dimension_numbers<[1], [0], [0], [1], [0, 0, 1, 1], [], []>} : vector<8x16xf32>, vector<16x128xf32>, vector<8x128xf32> -> vector<8x128xf32>
    %6 = vector.broadcast %2 : vector<1x128xf32> to vector<8x128xf32>
    %7 = arith.addf %5, %6 : vector<8x128xf32>
    %cst_7 = arith.constant dense<0.000000e+00> : vector<8xf32>
    %8 = vector.multi_reduction <add>, %7, %cst_7 [1] : vector<8x128xf32> to vector<8xf32>
    %9 = vector.shape_cast %8 : vector<8xf32> to vector<8x1xf32>
    %cst_8 = arith.constant 3.125000e-02 : f32
    %10 = vector.broadcast %cst_8 : f32 to vector<8x1xf32>
    %11 = arith.mulf %9, %10 : vector<8x1xf32>
    %12 = vector.broadcast %11 : vector<8x1xf32> to vector<8x128xf32>
    %13 = arith.subf %7, %12 : vector<8x128xf32>
    %14 = tpu.iota {dimensions = array<i32: 1>} : vector<1x128xi32>
    %c32_i32 = arith.constant 32 : i32
    %15 = vector.broadcast %c32_i32 : i32 to vector<1x128xi32>
    %16 = arith.cmpi slt, %14, %15 : vector<1x128xi32>
    %cst_9 = arith.constant 0.000000e+00 : f32
    %17 = vector.shape_cast %16 : vector<1x128xi1> to vector<1x128xi1>
    %18 = vector.broadcast %17 : vector<1x128xi1> to vector<8x128xi1>
    %19 = vector.broadcast %cst_9 : f32 to vector<8x128xf32>
    %20 = arith.select %18, %13, %19 : vector<8x128xi1>, vector<8x128xf32>
    %21 = arith.mulf %20, %20 : vector<8x128xf32>
    %cst_10 = arith.constant dense<0.000000e+00> : vector<8xf32>
    %22 = vector.multi_reduction <add>, %21, %cst_10 [1] : vector<8x128xf32> to vector<8xf32>
    %23 = vector.shape_cast %22 : vector<8xf32> to vector<8x1xf32>
    %cst_11 = arith.constant 3.125000e-02 : f32
    %24 = vector.broadcast %cst_11 : f32 to vector<8x1xf32>
    %25 = arith.mulf %23, %24 : vector<8x1xf32>
    %cst_12 = arith.constant 9.99999974E-6 : f32
    %26 = vector.broadcast %cst_12 : f32 to vector<8x1xf32>
    %27 = arith.addf %25, %26 : vector<8x1xf32>
    %28 = math.rsqrt %27 : vector<8x1xf32>
    %29 = vector.broadcast %28 : vector<8x1xf32> to vector<8x128xf32>
    %30 = vector.broadcast %3 : vector<1x128xf32> to vector<8x128xf32>
    %31 = arith.mulf %29, %30 : vector<8x128xf32>
    %32 = arith.mulf %20, %31 : vector<8x128xf32>
    %33 = vector.broadcast %4 : vector<1x128xf32> to vector<8x128xf32>
    %34 = arith.addf %32, %33 : vector<8x128xf32>
    %cst_13 = arith.constant 0.000000e+00 : f32
    %35 = vector.broadcast %cst_13 : f32 to vector<8x128xf32>
    %36 = arith.maximumf %34, %35 : vector<8x128xf32>
    %c0_14 = arith.constant 0 : index
    %c0_15 = arith.constant 0 : index
    %37 = vector.load %arg4[%c0_14, %c0_15] : memref<8x128xf32, #tpu.memory_space<vmem>>, vector<8x128xf32>
    tpu.vector_store %arg4[%c0_14, %c0_15], %36 {strides = array<i32>} : memref<8x128xf32, #tpu.memory_space<vmem>>, vector<8x128xf32>,
    return
  }
  func.func @transform_0(%arg0: i32) -> (i32, i32) {
    %c0_i32 = arith.constant 0 : i32
    %c0_i32_0 = arith.constant 0 : i32
    return %arg0, %c0_i32 : i32, i32
  }
  func.func @transform_1(%arg0: i32) -> (i32, i32) {
    %c0_i32 = arith.constant 0 : i32
    %c0_i32_0 = arith.constant 0 : i32
    %c0_i32_1 = arith.constant 0 : i32
    return %c0_i32, %c0_i32_0 : i32, i32
  }
  func.func @transform_2(%arg0: i32) -> (i32, i32) {
    %c0_i32 = arith.constant 0 : i32
    %c0_i32_0 = arith.constant 0 : i32
    %c0_i32_1 = arith.constant 0 : i32
    return %c0_i32, %c0_i32_0 : i32, i32
  }
  func.func @transform_3(%arg0: i32) -> (i32, i32) {
    %c0_i32 = arith.constant 0 : i32
    %c0_i32_0 = arith.constant 0 : i32
    return %arg0, %c0_i32 : i32, i32
  }
}

</mosaic_0001>

<llo_original>
// kernel: tpu_custom_call.1
$region0: #{tpu_custom_call.1}
  #allocation0 [shape = 'u32[]', space=smem, size = 0x4, offset = 0x4, fixed_abs, tag = 'smem constant byte address 0x4 - core index']
  #allocation1 [shape = 'u32[144,128]{1,0:T(1,128)}', space=vmem, size = 0x12000, scoped, tag = 'internal scratch']
  %s0 = inlined_call_operand.hbm [shape: f32[8,16], index: 0, kind: input, shape index: {}]
  %s1 = inlined_call_operand.hbm [shape: f32[16,128], index: 1, kind: input, shape index: {}]
  %s2 = inlined_call_operand.vmem [shape: f32[3,128], index: 2, kind: input, shape index: {}]
  %s3 = inlined_call_operand.hbm [shape: f32[8,128], index: 3, kind: output, shape index: {}]
  %s4 = sld [smem:[#allocation0]]
  $region30: #{tpu_custom_call.1} parent=0
    _
  %s6 = ssub.s32 1, %s4
  %s7 = scalar_select 0, %s6, %s4
  $region1: #{tpu_custom_call.1} parent=0
    #allocation2 [shape = 'u8[4096]{0}', space=vmem, size = 0x1000, scoped, tag = 'input window, operand 0, single buffered']
    #allocation3 [shape = 's32[1]{0}', space=sflag, size = 0x4, scoped, tag = 'scoped memory for tpu_custom_call.1']
    #allocation4 [shape = 's32[1]{0}', space=sflag, size = 0x4, scoped, tag = 'scoped memory for tpu_custom_call.1']
    #allocation5 [shape = 'u8[8192]{0}', space=vmem, size = 0x2000, scoped, tag = 'input window, operand 1, single buffered']
    #allocation6 [shape = 's32[1]{0}', space=sflag, size = 0x4, scoped, tag = 'scoped memory for tpu_custom_call.1']
    #allocation7 [shape = 'u8[4096]{0}', space=vmem, size = 0x1000, scoped, tag = 'output window, operand 0, single buffered']
    %8 = vsyncpa [#allocation3], 0
    %9 = vsyncpa [#allocation6], 0
    %10 = vsyncpa [#allocation4], 0
    // Predicated region
    $region2: #{tpu_custom_call.1} parent=1 // pred_check
      _
    $region3: #{tpu_custom_call.1} parent=1 // pred_check_branch
      %12 = sbr.rel (0) target = $region5
    $region4: #{tpu_custom_call.1} parent=1 // pred_region
      %s14 = ssub.s32 128, 128
      %15 = vsyncadd [#allocation3], %s14
      %s17 = sshll.u32 [#allocation2], 4
      %s18 = int_to_ptr.vmem [resolvable:$true] %s17
      %20 = dma.hbm_to_vmem [thread:$0]  %s0, 128, %s18, [#allocation3]
    $region5: #{tpu_custom_call.1} parent=1 // pred_fallthru
      _
    // Predicated region
    $region6: #{tpu_custom_call.1} parent=1 // pred_check
      _
    $region7: #{tpu_custom_call.1} parent=1 // pred_check_branch
      %22 = sbr.rel (0) target = $region9
    $region8: #{tpu_custom_call.1} parent=1 // pred_region
      %s24 = ssub.s32 256, 256
      %25 = vsyncadd [#allocation6], %s24
      %s26 = sshll.u32 [#allocation5], 4
      %s27 = int_to_ptr.vmem [resolvable:$true] %s26
      %32 = dma.hbm_to_vmem [thread:$0]  %s1, 256, %s27, [#allocation6], 128, 128, 8
    $region9: #{tpu_custom_call.1} parent=1 // pred_fallthru
      _
    // Predicated region
    $region10: #{tpu_custom_call.1} parent=1 // pred_check
      _
    $region11: #{tpu_custom_call.1} parent=1 // pred_check_branch
      %34 = sbr.rel (0) target = $region13
    $region12: #{tpu_custom_call.1} parent=1 // pred_region
      _
    $region13: #{tpu_custom_call.1} parent=1 // pred_fallthru
      _
    // Predicated region
    $region14: #{tpu_custom_call.1} parent=1 // pred_check
      _
    $region15: #{tpu_custom_call.1} parent=1 // pred_check_branch
      %36 = sbr.rel (0) target = $region17
    $region16: #{tpu_custom_call.1} parent=1 // pred_region
      %37 = dma.done [#allocation3], 128
    $region17: #{tpu_custom_call.1} parent=1 // pred_fallthru
      _
    // Predicated region
    $region18: #{tpu_custom_call.1} parent=1 // pred_check
      _
    $region19: #{tpu_custom_call.1} parent=1 // pred_check_branch
      %39 = sbr.rel (0) target = $region21
    $region20: #{tpu_custom_call.1} parent=1 // pred_region
      %40 = dma.done [#allocation6], 256
    $region21: #{tpu_custom_call.1} parent=1 // pred_fallthru
      _
    %v41 = vld [vmem:[#allocation2] sm:$0xff]
    %v42 = vld [vmem:[#allocation5] sm:$0xff]
    %v43 = vld [vmem:[#allocation5 + $0x8] sm:$0xff]
    %v44 = vld [vmem:[%s2] sm:$0x1]
    %v45 = vld [vmem:[%s2 + $0x1] sm:$0x1]
    %v46 = vld [vmem:[%s2 + $0x2] sm:$0x1]
    %v47 = vlaneseq
    %v48 = vshrl.u32 %v47, 7
    %v49 = vsub.s32 0, %v48
    %v50 = vrot.slane %v44, %v49
    %vm51 = vcmask 130048
    %v53 = vsel %vm51, %v41, 0
    %55 = vmatprep.subr.mxu0 0.0
    %56 = vmatpush1.msra.mxu0 %v42
    %57 = vmatprep.subr.mxu0 0.0
    %58 = vmatpush1.msra.mxu0 %v43
    %59 = vmatprep.subr.mxu0 0.0
    %60 = vmatpush1.msra.mxu0 0.0
    %61 = vmatprep.subr.mxu0 0.0
    %62 = vmatpush1.msra.mxu0 0.0
    %63 = vmatprep.subr.mxu0 0.0
    %64 = vmatpush1.msra.mxu0 0.0
    %65 = vmatprep.subr.mxu0 0.0
    %66 = vmatpush1.msra.mxu0 0.0
    %67 = vmatprep.subr.mxu0 0.0
    %68 = vmatpush1.msra.mxu0 0.0
    %69 = vmatprep.subr.mxu0 0.0
    %70 = vmatpush1.msra.mxu0 0.0
    %71 = vmatprep.subr.mxu0 0.0
    %72 = vmatpush1.msra.mxu0 0.0
    %73 = vmatprep.subr.mxu0 0.0
    %74 = vmatpush1.msra.mxu0 0.0
    %75 = vmatprep.subr.mxu0 0.0
    %76 = vmatpush1.msra.mxu0 0.0
    %77 = vmatprep.subr.mxu0 0.0
    %78 = vmatpush1.msra.mxu0 0.0
    %79 = vmatprep.subr.mxu0 0.0
    %80 = vmatpush1.msra.mxu0 0.0
    %81 = vmatprep.subr.mxu0 0.0
    %82 = vmatpush1.msra.mxu0 0.0
    %83 = vmatprep.subr.mxu0 0.0
    %84 = vmatpush1.msra.mxu0 0.0
    %85 = vmatprep.subr.mxu0 0.0
    %86 = vmatpush1.msra.mxu0 0.0
    %87 = vmatprep.subr.mxu0 0.0
    %88 = vmatpush1.msra.mxu0 0.0
    %89 = vmatprep.subr.mxu0 0.0
    %90 = vmatpush1.msra.mxu0 0.0
    %91 = vmatprep.subr.mxu0 0.0
    %92 = vmatpush1.msra.mxu0 0.0
    %93 = vmatprep.subr.mxu0 0.0
    %94 = vmatpush1.msra.mxu0 0.0
    %95 = vmatprep.subr.mxu0 0.0
    %96 = vmatpush1.msra.mxu0 0.0
    %97 = vmatprep.subr.mxu0 0.0
    %98 = vmatpush1.msra.mxu0 0.0
    %99 = vmatprep.subr.mxu0 0.0
    %100 = vmatpush1.msra.mxu0 0.0
    %101 = vmatprep.subr.mxu0 0.0
    %102 = vmatpush1.msra.mxu0 0.0
    %103 = vmatprep.subr.mxu0 0.0
    %104 = vmatpush1.msra.mxu0 0.0
    %105 = vmatprep.subr.mxu0 0.0
    %106 = vmatpush1.msra.mxu0 0.0
    %107 = vmatprep.subr.mxu0 0.0
    %108 = vmatpush1.msra.mxu0 0.0
    %109 = vmatprep.subr.mxu0 0.0
    %110 = vmatpush1.msra.mxu0 0.0
    %111 = vmatprep.subr.mxu0 0.0
    %112 = vmatpush1.msra.mxu0 0.0
    %113 = vmatprep.subr.mxu0 0.0
    %114 = vmatpush1.msra.mxu0 0.0
    %115 = vmatprep.subr.mxu0 0.0
    %116 = vmatpush1.msra.mxu0 0.0
    %117 = vmatprep.subr.mxu0 0.0
    %118 = vmatpush1.msra.mxu0 0.0
    %119 = vmatprep.mubr.f32.mxu0 0.0
    %120 = vmatmul.mubr.f32.gmra.mrb[0].mxu0 %v53
    %v121 = vpop.f32.mrb[0].mxu0
    %v122 = vadd.f32 %v50, %v121
    %v123 = vpop.f32.mrb[0].mxu0
    %124 = vdwg.mxu0
    %125 = vadd.xlane.f32.xlu0 %v122
    %v126 = vpop.xlane.xlu0 %125
    %v127 = vmul.f32 %v126, 0.03125
    %v128 = vsub.f32 %v122, %v127
    %v129 = vlaneseq
    %v130 = vand.u32 %v129, 127
    %vm131 = vcmp.lt.s32.totalorder %v130, 32
    %v132 = vsel %vm131, 1, 0
    %vm133 = vcmp.eq.s32.totalorder %v132, 1
    %v134 = vsel %vm133, %v128, 0.0
    %v135 = vmul.f32 %v134, %v134
    %136 = vadd.xlane.f32.xlu0 %v135
    %v137 = vpop.xlane.xlu0 %136
    %v138 = vmul.f32 %v137, 0.03125
    %v139 = vadd.f32 %v138, 1e-05
    %v140 = vrsqrt.pop %v139
    %v141 = vlaneseq
    %v142 = vshrl.u32 %v141, 7
    %v143 = vsub.s32 0, %v142
    %v144 = vrot.slane %v45, %v143
    %v145 = vmul.f32 %v140, %v144
    %v146 = vmul.f32 %v134, %v145
    %v147 = vlaneseq
    %v148 = vshrl.u32 %v147, 7
    %v149 = vsub.s32 0, %v148
    %v150 = vrot.slane %v46, %v149
    %v151 = vadd.f32 %v146, %v150
    %v152 = vmax.f32 %v151, 0.0
    %153 = vst [vmem:[#allocation7] sm:$0xff] %v152
    // Predicated region
    $region22: #{tpu_custom_call.1} parent=1 // pred_check
      _
    $region23: #{tpu_custom_call.1} parent=1 // pred_check_branch
      %155 = sbr.rel (0) target = $region25
    $region24: #{tpu_custom_call.1} parent=1 // pred_region
      %s157 = ssub.s32 128, 128
      %158 = vsyncadd [#allocation4], %s157
      %s160 = sshll.u32 [#allocation7], 4
      %s161 = int_to_ptr.vmem [resolvable:$true] %s160
      %163 = dma.vmem_to_hbm [thread:$0]  %s161, 128, %s3, [#allocation4]
    $region25: #{tpu_custom_call.1} parent=1 // pred_fallthru
      _
    // Predicated region
    $region26: #{tpu_custom_call.1} parent=1 // pred_check
      _
    $region27: #{tpu_custom_call.1} parent=1 // pred_check_branch
      %165 = sbr.rel (0) target = $region29
    $region28: #{tpu_custom_call.1} parent=1 // pred_region
      %166 = dma.done [#allocation4], 128
    $region29: #{tpu_custom_call.1} parent=1 // pred_fallthru
      _
    %167 = vsyncpa [#allocation3], 1
    %168 = vsyncpa [#allocation6], 1
    %169 = vsyncpa [#allocation4], 1

</llo_original>
